<compile_context>
chip_gen: v5e
topology: v5e:2x2
jax: 0.10.0
libtpu: 0.0.40
codegen_flags: <defaults>
</compile_context>

<pallas_src>
import functools

import jax
import jax.numpy as jnp
from jax.experimental import pallas as pl
from jax.experimental.pallas import tpu as pltpu


def _round_up(x, m):
    return ((x + m - 1) // m) * m


_TARGET_BLOCK_BYTES = 2 * 1024 * 1024   # ~2 MiB per (tb, C) f32 intermediate
_MAX_BLOCK_ROWS = 8192


def _choose_block_rows(b, c):
    """Row tile: C-aware, VMEM-safe on all generations, >=2 tiles when batch allows."""
    tb = _TARGET_BLOCK_BYTES // (c * 4)
    tb = max(min(tb, _MAX_BLOCK_ROWS), 8)
    tb = _round_up(tb, 8)
    tb = min(tb, _round_up(b, 8))
    # Keep at least two row tiles when possible so v7x's two TensorCores both get work.
    if b > 8:
        tb = min(tb, _round_up((b + 1) // 2, 8))
    return max(tb, 8)


def _ce_label_smooth_kernel(logits_ref, targets_ref, loss_ref, *, epsilon, num_classes):
    # logits_ref : (tb, C) tile of the prediction matrix (input dtype).
    # targets_ref: (tb, 1) int32 labels for this row tile.
    # loss_ref   : (tb, 1) f32 per-row smoothed cross-entropy loss.
    x = logits_ref[...]
    if x.dtype != jnp.bfloat16:
        # Non-bf16 inputs are computed in f32.  (bf16 stays packed on the VPU/EUP of
        # v6e/v7x; on v5e Mosaic upcasts it automatically.)
        x = x.astype(jnp.float32)
    tgt = targets_ref[...]                                # (tb, 1) int32
    tb, c = x.shape

    col = jax.lax.broadcasted_iota(jnp.int32, (tb, c), 1)

    # Row statistics — no (tb, C) log_probs is ever materialized.
    m = jnp.max(x, axis=-1, keepdims=True)                # (tb, 1), input compute dtype
    e = jnp.exp(x - m)                                    # EUP pass
    s = jnp.sum(e, axis=-1, keepdims=True, dtype=jnp.float32)
    z = m.astype(jnp.float32) + jnp.log(s)                # per-row logsumexp, f32

    sum_x = jnp.sum(x, axis=-1, keepdims=True, dtype=jnp.float32)
    tgt_x = jnp.sum(jnp.where(col == tgt, x, jnp.zeros_like(x)),
                    axis=-1, keepdims=True, dtype=jnp.float32)

    smooth = jnp.float32(epsilon / num_classes)           # eps / C
    conf = jnp.float32(1.0 - epsilon)                     # 1 - eps
    cf = jnp.float32(num_classes)

    # loss = -(eps/C) * sum_j log_probs[j] - (1-eps) * log_probs[target]
    #      = -(eps/C) * (sum_x - C*z)      - (1-eps) * (tgt_x - z)
    loss_ref[...] = -smooth * (sum_x - cf * z) - conf * (tgt_x - z)


def cross_entropy_label_smooth(inputs, targets, num_classes, epsilon=0.1,
                               reduction=True, block_rows=None):
    """Pallas TPU implementation of CrossEntropyLabelSmooth.forward(inputs, targets)."""
    assert inputs.ndim == 2 and targets.ndim == 1
    b, c = inputs.shape
    assert c == num_classes
    assert targets.shape[0] == b

    # Metadata-only reshape so labels ride along as a (B, 1) int32 column.
    targets_2d = targets.astype(jnp.int32).reshape(b, 1)

    if block_rows is None:
        tb = _choose_block_rows(b, c)
    else:
        tb = min(max(_round_up(int(block_rows), 8), 8), _round_up(b, 8))

    grid = (pl.cdiv(b, tb),)   # ragged last block is masked by Pallas; no pad copy.

    kernel = functools.partial(
        _ce_label_smooth_kernel, epsilon=float(epsilon), num_classes=int(num_classes)
    )

    cost = pl.CostEstimate(
        flops=7 * b * c,                          # max/sub/cmp/select + three row sums
        transcendentals=b * c + b,                # exp per element + log per row
        bytes_accessed=b * c * inputs.dtype.itemsize + b * 4 + b * 4,
    )

    per_row = pl.pallas_call(
        kernel,
        grid=grid,
        in_specs=[
            pl.BlockSpec((tb, c), lambda i: (i, 0)),      # logits row tile (full C)
            pl.BlockSpec((tb, 1), lambda i: (i, 0)),      # labels row tile
        ],
        out_specs=pl.BlockSpec((tb, 1), lambda i: (i, 0)),
        out_shape=jax.ShapeDtypeStruct((b, 1), jnp.float32),
        compiler_params=pltpu.CompilerParams(
            dimension_semantics=("parallel",),            # rows independent -> megacore
            vmem_limit_bytes=32 * 1024 * 1024,
        ),
        cost_estimate=cost,
    )(inputs, targets_2d)

    loss = per_row[:, 0]
    if reduction:
        return jnp.mean(loss)
    return loss


def _ce_label_smooth_ref(inputs, targets, num_classes, epsilon=0.1, reduction=True):
    """Pure-JAX reference mirroring the PyTorch module."""
    log_probs = jax.nn.log_softmax(inputs.astype(jnp.float32), axis=1)
    onehot = jax.nn.one_hot(targets, num_classes, dtype=jnp.float32)
    t = (1.0 - epsilon) * onehot + epsilon / num_classes
    loss = -(t * log_probs).sum(axis=1)
    return loss.mean() if reduction else loss


if __name__ == "__main__":
    key = jax.random.PRNGKey(0)
    k1, k2, k3, k4 = jax.random.split(key, 4)

    num_classes = 32
    epsilon = 0.1

    # Case 1: batch divisible by the row tile, reduction=True (module default).
    b1 = 8
    logits1 = jax.random.normal(k1, (b1, num_classes), dtype=jnp.float32)
    labels1 = jax.random.randint(k2, (b1,), 0, num_classes, dtype=jnp.int32)
    loss1 = jax.block_until_ready(
        cross_entropy_label_smooth(logits1, labels1, num_classes, epsilon, reduction=True))
    ref1 = _ce_label_smooth_ref(logits1, labels1, num_classes, epsilon, reduction=True)
    assert jnp.allclose(loss1, ref1, rtol=1e-5, atol=1e-5), (loss1, ref1)

    # Case 2: ragged last row tile (no wrapper pad), reduction=False (per-sample losses).
    b2 = 13
    logits2 = jax.random.normal(k3, (b2, num_classes), dtype=jnp.float32)
    labels2 = jax.random.randint(k4, (b2,), 0, num_classes, dtype=jnp.int32)
    loss2 = jax.block_until_ready(
        cross_entropy_label_smooth(logits2, labels2, num_classes, epsilon, reduction=False))
    ref2 = _ce_label_smooth_ref(logits2, labels2, num_classes, epsilon, reduction=False)
    assert jnp.allclose(loss2, ref2, rtol=1e-5, atol=1e-5), (loss2, ref2)

    print("KERNEL_OK")
</pallas_src>

<mosaic_0001>
module attributes {stable_mosaic.version = 11 : i64} {
  func.func @_ce_label_smooth_kernel(%arg0: i32, %arg1: memref<8x32xf32, #tpu.memory_space<vmem>>, %arg2: memref<8x1xi32, #tpu.memory_space<vmem>>, %arg3: memref<8x1xf32, #tpu.memory_space<vmem>>) attributes {dimension_semantics = [#tpu.dimension_semantics<parallel>], iteration_bounds = array<i64: 1>, scalar_prefetch = 0 : i64, scratch_operands = 0 : i64, tpu.core_type = #tpu.core_type<tc>, window_params = [{transform_indices = @transform_0, window_bounds = array<i64: 8, 32>}, {transform_indices = @transform_1, window_bounds = array<i64: 8, 1>}, {transform_indices = @transform_2, window_bounds = array<i64: 8, 1>}]} {
    %c0 = arith.constant 0 : index
    %c0_0 = arith.constant 0 : index
    %0 = vector.load %arg1[%c0, %c0_0] : memref<8x32xf32, #tpu.memory_space<vmem>>, vector<8x32xf32>
    %c0_1 = arith.constant 0 : index
    %c0_2 = arith.constant 0 : index
    %1 = vector.load %arg2[%c0_1, %c0_2] : memref<8x1xi32, #tpu.memory_space<vmem>>, vector<8x1xi32>
    %2 = tpu.iota {dimensions = array<i32: 1>} : vector<8x32xi32>
    %cst = arith.constant dense<0xFF800000> : vector<8xf32>
    %3 = vector.multi_reduction <maximumf>, %0, %cst [1] : vector<8x32xf32> to vector<8xf32>
    %4 = vector.shape_cast %3 : vector<8xf32> to vector<8x1xf32>
    %5 = vector.broadcast %4 : vector<8x1xf32> to vector<8x32xf32>
    %6 = arith.subf %0, %5 : vector<8x32xf32>
    %7 = math.exp %6 : vector<8x32xf32>
    %cst_3 = arith.constant dense<0.000000e+00> : vector<8xf32>
    %8 = vector.multi_reduction <add>, %7, %cst_3 [1] : vector<8x32xf32> to vector<8xf32>
    %9 = vector.shape_cast %8 : vector<8xf32> to vector<8x1xf32>
    %10 = math.log %9 : vector<8x1xf32>
    %11 = arith.addf %4, %10 : vector<8x1xf32>
    %cst_4 = arith.constant dense<0.000000e+00> : vector<8xf32>
    %12 = vector.multi_reduction <add>, %0, %cst_4 [1] : vector<8x32xf32> to vector<8xf32>
    %13 = vector.shape_cast %12 : vector<8xf32> to vector<8x1xf32>
    %14 = vector.broadcast %1 : vector<8x1xi32> to vector<8x32xi32>
    %15 = arith.cmpi eq, %2, %14 : vector<8x32xi32>
    %cst_5 = arith.constant 0.000000e+00 : f32
    %16 = vector.broadcast %cst_5 : f32 to vector<8x32xf32>
    %17 = arith.select %15, %0, %16 : vector<8x32xi1>, vector<8x32xf32>
    %cst_6 = arith.constant dense<0.000000e+00> : vector<8xf32>
    %18 = vector.multi_reduction <add>, %17, %cst_6 [1] : vector<8x32xf32> to vector<8xf32>
    %19 = vector.shape_cast %18 : vector<8xf32> to vector<8x1xf32>
    %cst_7 = arith.constant 0.000000e+00 : f32
    %cst_8 = arith.constant 3.125000e-03 : f32
    %20 = arith.subf %cst_7, %cst_8 : f32
    %cst_9 = arith.constant 3.200000e+01 : f32
    %21 = vector.broadcast %cst_9 : f32 to vector<8x1xf32>
    %22 = arith.mulf %21, %11 : vector<8x1xf32>
    %23 = arith.subf %13, %22 : vector<8x1xf32>
    %24 = vector.broadcast %20 : f32 to vector<8x1xf32>
    %25 = arith.mulf %24, %23 : vector<8x1xf32>
    %26 = arith.subf %19, %11 : vector<8x1xf32>
    %cst_10 = arith.constant 0.899999976 : f32
    %27 = vector.broadcast %cst_10 : f32 to vector<8x1xf32>
    %28 = arith.mulf %27, %26 : vector<8x1xf32>
    %29 = arith.subf %25, %28 : vector<8x1xf32>
    %c0_11 = arith.constant 0 : index
    %c0_12 = arith.constant 0 : index
    %30 = vector.load %arg3[%c0_11, %c0_12] : memref<8x1xf32, #tpu.memory_space<vmem>>, vector<8x1xf32>
    tpu.vector_store %arg3[%c0_11, %c0_12], %29 {strides = array<i32>} : memref<8x1xf32, #tpu.memory_space<vmem>>, vector<8x1xf32>,
    return
  }
  func.func @transform_0(%arg0: i32) -> (i32, i32) {
    %c0_i32 = arith.constant 0 : i32
    %c0_i32_0 = arith.constant 0 : i32
    return %arg0, %c0_i32 : i32, i32
  }
  func.func @transform_1(%arg0: i32) -> (i32, i32) {
    %c0_i32 = arith.constant 0 : i32
    %c0_i32_0 = arith.constant 0 : i32
    return %arg0, %c0_i32 : i32, i32
  }
  func.func @transform_2(%arg0: i32) -> (i32, i32) {
    %c0_i32 = arith.constant 0 : i32
    %c0_i32_0 = arith.constant 0 : i32
    return %arg0, %c0_i32 : i32, i32
  }
}

</mosaic_0001>

<llo_original>
// kernel: tpu_custom_call.1
$region0: #{tpu_custom_call.1}
  #allocation0 [shape = 'u32[]', space=smem, size = 0x4, offset = 0x4, fixed_abs, tag = 'smem constant byte address 0x4 - core index']
  #allocation1 [shape = 'u32[72,128]{1,0:T(1,128)}', space=vmem, size = 0x9000, scoped, tag = 'internal scratch']
  %s0 = inlined_call_operand.vmem [shape: f32[8,32], index: 0, kind: input, shape index: {}]
  %s1 = inlined_call_operand.vmem [shape: s32[8,1], index: 1, kind: input, shape index: {}]
  %s2 = inlined_call_operand.vmem [shape: f32[8,1], index: 2, kind: output, shape index: {}]
  %s3 = sld [smem:[#allocation0]]
  $region18: #{tpu_custom_call.1} parent=0
    _
  %s5 = ssub.s32 1, %s3
  %s6 = scalar_select 0, %s5, %s3
  // Predicated region
  $region2: #{tpu_custom_call.1} parent=0 // pred_check
    _
  $region3: #{tpu_custom_call.1} parent=0 // pred_check_branch
    %8 = sbr.rel (0) target = $region5
  $region4: #{tpu_custom_call.1} parent=0 // pred_region
    _
  $region5: #{tpu_custom_call.1} parent=0 // pred_fallthru
    _
  // Predicated region
  $region6: #{tpu_custom_call.1} parent=0 // pred_check
    _
  $region7: #{tpu_custom_call.1} parent=0 // pred_check_branch
    %10 = sbr.rel (0) target = $region9
  $region8: #{tpu_custom_call.1} parent=0 // pred_region
    _
  $region9: #{tpu_custom_call.1} parent=0 // pred_fallthru
    _
  %v11 = vld [vmem:[%s0] sm:$0xff]
  %v12 = vld [vmem:[%s1] sm:$0xff]
  %v13 = vlaneseq
  %v14 = vand.u32 %v13, 127
  %vm15 = vcmask 261120
  %v16 = vsel %vm15, %v11, -inf
  %17 = vmax.xlane.f32.xlu0 %v16
  %v18 = vpop.xlane.xlu0 %17
  %v19 = vsub.f32 %v11, %v18
  %v20 = vmul.f32 %v19, 1.442695
  %v21 = vpow.pop %v20
  %v22 = vsel %vm15, %v21, 0.0
  %23 = vadd.xlane.f32.xlu0 %v22
  %v24 = vpop.xlane.xlu0 %23
  %v25 = vlog2.pop %v24
  %v26 = vmul.f32 %v25, 0.6931472
  %v27 = vadd.f32 %v18, %v26
  %v28 = vsel %vm15, %v11, 0.0
  %29 = vadd.xlane.f32.xlu0 %v28
  %v30 = vpop.xlane.xlu0 %29
  %31 = vset.pattern.permute.xlu0 0
  %32 = vperm.xlu0 %31, %v12
  %v33 = vpop.permute.xlu0 %32
  %vm34 = vcmp.eq.s32.totalorder %v14, %v33
  %v35 = vsel %vm34, %v11, 0.0
  %v36 = vsel %vm15, %v35, 0.0
  %37 = vadd.xlane.f32.xlu0 %v36
  %v38 = vpop.xlane.xlu0 %37
  %v39 = vmul.f32 %v27, 32.0
  %v40 = vsub.f32 %v30, %v39
  %v41 = vmul.f32 %v40, -0.003125
  %v42 = vsub.f32 %v38, %v27
  %v43 = vmul.f32 %v42, 0.9
  %v44 = vsub.f32 %v41, %v43
  %vm45 = vcmask 7168
  %46 = vst.msk [vmem:[%s2] sm:$0xff] %vm45, %v44
  // Predicated region
  $region10: #{tpu_custom_call.1} parent=0 // pred_check
    _
  $region11: #{tpu_custom_call.1} parent=0 // pred_check_branch
    %48 = sbr.rel (0) target = $region13
  $region12: #{tpu_custom_call.1} parent=0 // pred_region
    _
  $region13: #{tpu_custom_call.1} parent=0 // pred_fallthru
    _
  // Predicated region
  $region14: #{tpu_custom_call.1} parent=0 // pred_check
    _
  $region15: #{tpu_custom_call.1} parent=0 // pred_check_branch
    %50 = sbr.rel (0) target = $region17
  $region16: #{tpu_custom_call.1} parent=0 // pred_region
    _
  $region17: #{tpu_custom_call.1} parent=0 // pred_fallthru
    _

</llo_original>
